<compile_context>
chip_gen: v7x
topology: tpu7x:2x2x1
jax: 0.10.0
libtpu: 0.0.40
codegen_flags: <defaults>
</compile_context>

<pallas_src>
import functools

import jax
import jax.numpy as jnp
from jax.experimental import pallas as pl
from jax.experimental.pallas import tpu as pltpu


def _round_up(x: int, m: int) -> int:
    return (x + m - 1) // m * m


@functools.lru_cache(maxsize=None)
def _single_buffer_supported() -> bool:
    """Probe whether this jax version accepts pipeline_mode=pl.Buffered(1) on a
    top-level pallas_call BlockSpec (used to single-buffer resident weights).
    Falls back to default double-buffering if unsupported."""
    def _copy(x_ref, o_ref):
        o_ref[...] = x_ref[...]

    try:
        spec = pl.BlockSpec((8, 128), lambda i: (0, 0), pipeline_mode=pl.Buffered(1))
        fn = pl.pallas_call(
            _copy,
            out_shape=jax.ShapeDtypeStruct((8, 128), jnp.float32),
            grid=(1,),
            in_specs=[spec],
            out_specs=pl.BlockSpec((8, 128), lambda i: (0, 0)),
        )
        jax.block_until_ready(fn(jnp.zeros((8, 128), jnp.float32)))
        return True
    except Exception:
        return False


def _mlp_fused_kernel(*refs, num_layers: int, alpha: float):
    """Fused MLP: h = x; repeat: h = leaky_relu(h @ W_i + b_i)."""
    x_ref = refs[0]
    w_refs = refs[1:1 + num_layers]
    b_ref = refs[1 + num_layers]       # packed (num_layers, max_pdim) f32 biases
    o_ref = refs[2 + num_layers]

    b_all = b_ref[...]                 # tiny; load once
    h = x_ref[...].astype(jnp.float32)
    for li, w_ref in enumerate(w_refs):
        pdim_out = w_ref.shape[1]
        # bf16 operands on the MXU, f32 accumulation.
        y = jnp.dot(h.astype(w_ref.dtype), w_ref[...],
                    preferred_element_type=jnp.float32)
        y = y + b_all[li:li + 1, :pdim_out]          # (1, F) broadcasts over rows
        h = jnp.maximum(y, alpha * y)                # LeakyReLU(0.2), alpha < 1
    o_ref[...] = h.astype(o_ref.dtype)


def prepare_mlp_params(params, weight_dtype=jnp.bfloat16):
    """One-time padding/packing of parameters (hoisted out of the per-call path).

    params: list of (W (in_f, out_f), b (1, out_f) or (out_f,)) f32 arrays.
    Returns dict with lane-dense bf16 weights, a packed f32 bias block and dims.
    """
    num_layers = len(params)
    dims = [params[0][0].shape[0]] + [w.shape[1] for w, _ in params]
    pdims = [_round_up(d, 128) for d in dims]
    max_pdim = max(pdims[1:])

    w_ps = []
    for li, (w, _) in enumerate(params):
        fi, fo = w.shape
        wp = jnp.zeros((pdims[li], pdims[li + 1]), weight_dtype)
        wp = wp.at[:fi, :fo].set(w.astype(weight_dtype))
        w_ps.append(wp)

    b_packed = jnp.zeros((num_layers, max_pdim), jnp.float32)
    for li, (_, b) in enumerate(params):
        b_flat = jnp.asarray(b, jnp.float32).reshape(-1)
        b_packed = b_packed.at[li, :b_flat.shape[0]].set(b_flat)

    return {"w": tuple(w_ps), "b": b_packed,
            "dims": tuple(dims), "pdims": tuple(pdims)}


def _choose_row_tile(n: int, max_tile: int = 512):
    """Pick the row tile minimizing padded rows + per-step overhead
    (~0.35us/step ~= 16 rows of work), preferring larger tiles on ties, then
    guarantee >=2 grid steps (v7x megacore) when there is enough work."""
    candidates = [t for t in (512, 256, 128, 64, 32, 16, 8) if t <= max_tile]
    step_cost_rows = 16
    best_tm, best_npad, best_score = 8, _round_up(n, 8), None
    for t in candidates:                       # large -> small, strict '<' keeps larger on ties
        n_pad = _round_up(n, t)
        score = n_pad + (n_pad // t) * step_cost_rows
        if best_score is None or score < best_score:
            best_tm, best_npad, best_score = t, n_pad, score
    while best_npad // best_tm < 2 and best_tm > 8 and n > 8:
        best_tm //= 2
        best_npad = _round_up(n, best_tm)
    return best_tm, best_npad


def mlp_forward(x: jax.Array, prep, alpha: float = 0.2, max_row_tile: int = 512) -> jax.Array:
    """MLP.forward as one fused Pallas kernel.  x: (N, in_features) f32."""
    n, in_f = x.shape
    dims, pdims = prep["dims"], prep["pdims"]
    assert in_f == dims[0], (in_f, dims[0])
    w_ps, b_packed = prep["w"], prep["b"]
    num_layers = len(w_ps)

    tm, n_pad = _choose_row_tile(n, max_row_tile)

    # Skip the activation pad (extra HBM round trip) when not required.
    if n_pad == n and pdims[0] == in_f:
        x_p = x
    else:
        x_p = jnp.zeros((n_pad, pdims[0]), x.dtype).at[:n, :in_f].set(x)

    grid = (n_pad // tm,)
    single_buf = _single_buffer_supported()

    def _resident_spec(shape):
        # Constant block index -> stays resident in VMEM across the grid.
        if single_buf:
            return pl.BlockSpec(shape, lambda i: (0, 0), pipeline_mode=pl.Buffered(1))
        return pl.BlockSpec(shape, lambda i: (0, 0))

    in_specs = [pl.BlockSpec((tm, pdims[0]), lambda i: (i, 0))]
    for li in range(num_layers):
        in_specs.append(_resident_spec((pdims[li], pdims[li + 1])))
    in_specs.append(_resident_spec((num_layers, b_packed.shape[1])))
    out_spec = pl.BlockSpec((tm, pdims[-1]), lambda i: (i, 0))

    # VMEM budget: double-buffered activation tiles + resident weights/biases
    # + in-kernel f32 intermediates, with headroom.
    itemsize_x = jnp.dtype(x.dtype).itemsize
    w_buf_factor = 1 if single_buf else 2
    bytes_w = w_buf_factor * (sum(int(w.size) * w.dtype.itemsize for w in w_ps)
                              + int(b_packed.size) * 4)
    bytes_io = 2 * tm * pdims[0] * itemsize_x + 2 * tm * pdims[-1] * itemsize_x
    bytes_act = 4 * tm * max(pdims) * 4
    vmem_need = bytes_w + bytes_io + bytes_act
    vmem_limit = int(min(max(int(vmem_need * 1.25) + (4 << 20), 32 << 20), 64 << 20))

    flops = 2 * n * sum(dims[li] * dims[li + 1] for li in range(num_layers))
    bytes_accessed = (x_p.size * itemsize_x
                      + sum(int(w.size) * w.dtype.itemsize for w in w_ps)
                      + int(b_packed.size) * 4
                      + n_pad * pdims[-1] * itemsize_x)
    cost = pl.CostEstimate(flops=flops, transcendentals=0,
                           bytes_accessed=int(bytes_accessed))

    out_p = pl.pallas_call(
        functools.partial(_mlp_fused_kernel, num_layers=num_layers, alpha=alpha),
        out_shape=jax.ShapeDtypeStruct((n_pad, pdims[-1]), x.dtype),
        grid=grid,
        in_specs=in_specs,
        out_specs=out_spec,
        compiler_params=pltpu.CompilerParams(
            dimension_semantics=("parallel",),      # shard row tiles across TCs on v7x
            vmem_limit_bytes=vmem_limit,
        ),
        cost_estimate=cost,
    )(x_p, *w_ps, b_packed)

    return out_p[:n, :dims[-1]]


def init_mlp_params(key, in_features: int, out_features: int, layer_width: list):
    """Deterministic PyTorch-default-style init (uniform +-1/sqrt(fan_in))."""
    dims_in = [in_features] + list(layer_width)
    dims_out = list(layer_width) + [out_features]
    params = []
    for fi, fo in zip(dims_in, dims_out):
        key, kw, kb = jax.random.split(key, 3)
        bound = 1.0 / jnp.sqrt(jnp.float32(fi))
        # Stored as (in, out): transpose of PyTorch's (out, in) Linear weight.
        w = jax.random.uniform(kw, (fi, fo), jnp.float32, -bound, bound)
        b = jax.random.uniform(kb, (1, fo), jnp.float32, -bound, bound)
        params.append((w, b))
    return params


def _mlp_reference(x, params, alpha=0.2, bf16_operands=True):
    """Pure-JAX reference; bf16_operands=True mimics the kernel's MXU dtype."""
    h = x
    for w, b in params:
        if bf16_operands:
            y = jnp.dot(h.astype(jnp.bfloat16), w.astype(jnp.bfloat16),
                        preferred_element_type=jnp.float32) + b
        else:
            y = h @ w + b
        h = jnp.maximum(y, alpha * y)
    return h


if __name__ == "__main__":
    # Small shapes consistent with the module: (N, H_in) -> (N, H_out)
    batch = 2
    in_features = 32
    layer_width = [64, 48]
    out_features = 16

    key = jax.random.PRNGKey(0)
    key, kx = jax.random.split(key)
    x = jax.random.normal(kx, (batch, in_features), jnp.float32)

    params = init_mlp_params(key, in_features, out_features, layer_width)
    prep = prepare_mlp_params(params)           # pad/pack/bf16-cast ONCE, reuse every call

    # Fused single-call MLP.
    y = jax.block_until_ready(mlp_forward(x, prep))
    assert y.shape == (batch, out_features), y.shape
    assert y.dtype == jnp.float32

    # Numerical check against a pure-JAX reference (bf16 MXU operands, f32 acc).
    y_ref = _mlp_reference(x, params, bf16_operands=True)
    assert jnp.allclose(y, y_ref, atol=2e-2, rtol=2e-2), float(jnp.max(jnp.abs(y - y_ref)))

    # Non-multiple batch: exercises row-tile selection, padding and a multi-step grid.
    key, kx2 = jax.random.split(key)
    x_big = jax.random.normal(kx2, (300, in_features), jnp.float32)
    y_big = jax.block_until_ready(mlp_forward(x_big, prep))
    assert y_big.shape == (300, out_features)
    y_big_ref = _mlp_reference(x_big, params, bf16_operands=True)
    assert jnp.allclose(y_big, y_big_ref, atol=2e-2, rtol=2e-2), \
        float(jnp.max(jnp.abs(y_big - y_big_ref)))

    print("KERNEL_OK")
</pallas_src>

<mosaic_0001>
module attributes {stable_mosaic.version = 11 : i64} {
  func.func @_copy(%arg0: i32, %arg1: memref<8x128xf32, #tpu.memory_space<vmem>>, %arg2: memref<8x128xf32, #tpu.memory_space<vmem>>) attributes {dimension_semantics = [#tpu.dimension_semantics<arbitrary>], iteration_bounds = array<i64: 1>, scalar_prefetch = 0 : i64, scratch_operands = 0 : i64, tpu.core_type = #tpu.core_type<tc>, window_params = [{pipeline_mode = #tpu.pipeline_mode<synchronous>, transform_indices = @transform_0, window_bounds = array<i64: 8, 128>}, {pipeline_mode = #tpu.pipeline_mode<synchronous>, transform_indices = @transform_1, window_bounds = array<i64: 8, 128>}]} {
    %c0 = arith.constant 0 : index
    %c0_0 = arith.constant 0 : index
    %0 = vector.load %arg1[%c0, %c0_0] : memref<8x128xf32, #tpu.memory_space<vmem>>, vector<8x128xf32>
    %c0_1 = arith.constant 0 : index
    %c0_2 = arith.constant 0 : index
    %1 = vector.load %arg2[%c0_1, %c0_2] : memref<8x128xf32, #tpu.memory_space<vmem>>, vector<8x128xf32>
    tpu.vector_store %arg2[%c0_1, %c0_2], %0 {strides = array<i32>} : memref<8x128xf32, #tpu.memory_space<vmem>>, vector<8x128xf32>,
    return
  }
  func.func @transform_0(%arg0: i32) -> (i32, i32) {
    %c0_i32 = arith.constant 0 : i32
    %c0_i32_0 = arith.constant 0 : i32
    %c0_i32_1 = arith.constant 0 : i32
    return %c0_i32, %c0_i32_0 : i32, i32
  }
  func.func @transform_1(%arg0: i32) -> (i32, i32) {
    %c0_i32 = arith.constant 0 : i32
    %c0_i32_0 = arith.constant 0 : i32
    %c0_i32_1 = arith.constant 0 : i32
    return %c0_i32, %c0_i32_0 : i32, i32
  }
}

module attributes {stable_mosaic.version = 11 : i64} {
  func.func @_mlp_fused_kernel(%arg0: i32, %arg1: memref<8x128xf32, #tpu.memory_space<vmem>>, %arg2: memref<128x128xbf16, #tpu.memory_space<vmem>>, %arg3: memref<128x128xbf16, #tpu.memory_space<vmem>>, %arg4: memref<128x128xbf16, #tpu.memory_space<vmem>>, %arg5: memref<3x128xf32, #tpu.memory_space<vmem>>, %arg6: memref<8x128xf32, #tpu.memory_space<vmem>>) attributes {dimension_semantics = [#tpu.dimension_semantics<parallel>], iteration_bounds = array<i64: 1>, scalar_prefetch = 0 : i64, scratch_operands = 0 : i64, tpu.core_type = #tpu.core_type<tc>, window_params = [{transform_indices = @transform_0, window_bounds = array<i64: 8, 128>}, {pipeline_mode = #tpu.pipeline_mode<synchronous>, transform_indices = @transform_1, window_bounds = array<i64: 128, 128>}, {pipeline_mode = #tpu.pipeline_mode<synchronous>, transform_indices = @transform_2, window_bounds = array<i64: 128, 128>}, {pipeline_mode = #tpu.pipeline_mode<synchronous>, transform_indices = @transform_3, window_bounds = array<i64: 128, 128>}, {pipeline_mode = #tpu.pipeline_mode<synchronous>, transform_indices = @transform_4, window_bounds = array<i64: 3, 128>}, {transform_indices = @transform_5, window_bounds = array<i64: 8, 128>}]} {
    %c0 = arith.constant 0 : index
    %c0_0 = arith.constant 0 : index
    %0 = vector.load %arg5[%c0, %c0_0] : memref<3x128xf32, #tpu.memory_space<vmem>>, vector<3x128xf32>
    %c0_1 = arith.constant 0 : index
    %c0_2 = arith.constant 0 : index
    %1 = vector.load %arg1[%c0_1, %c0_2] : memref<8x128xf32, #tpu.memory_space<vmem>>, vector<8x128xf32>
    %2 = arith.truncf %1 : vector<8x128xf32> to vector<8x128xbf16>
    %c0_3 = arith.constant 0 : index
    %c0_4 = arith.constant 0 : index
    %3 = vector.load %arg2[%c0_3, %c0_4] : memref<128x128xbf16, #tpu.memory_space<vmem>>, vector<128x128xbf16>
    %cst = arith.constant dense<0.000000e+00> : vector<8x128xf32>
    %4 = tpu.matmul %2, %3, %cst {dimension_numbers = #tpu.dot_dimension_numbers<[1], [0], [0], [1], [0, 0, 1, 1], [], []>} : vector<8x128xbf16>, vector<128x128xbf16>, vector<8x128xf32> -> vector<8x128xf32>
    %5 = vector.extract_strided_slice %0 {offsets = [0, 0], sizes = [1, 128], strides = [1, 1]} : vector<3x128xf32> to vector<1x128xf32>
    %6 = vector.broadcast %5 : vector<1x128xf32> to vector<8x128xf32>
    %7 = arith.addf %4, %6 : vector<8x128xf32>
    %cst_5 = arith.constant 2.000000e-01 : f32
    %8 = vector.broadcast %cst_5 : f32 to vector<8x128xf32>
    %9 = arith.mulf %8, %7 : vector<8x128xf32>
    %10 = arith.maximumf %7, %9 : vector<8x128xf32>
    %11 = arith.truncf %10 : vector<8x128xf32> to vector<8x128xbf16>
    %c0_6 = arith.constant 0 : index
    %c0_7 = arith.constant 0 : index
    %12 = vector.load %arg3[%c0_6, %c0_7] : memref<128x128xbf16, #tpu.memory_space<vmem>>, vector<128x128xbf16>
    %cst_8 = arith.constant dense<0.000000e+00> : vector<8x128xf32>
    %13 = tpu.matmul %11, %12, %cst_8 {dimension_numbers = #tpu.dot_dimension_numbers<[1], [0], [0], [1], [0, 0, 1, 1], [], []>} : vector<8x128xbf16>, vector<128x128xbf16>, vector<8x128xf32> -> vector<8x128xf32>
    %14 = vector.extract_strided_slice %0 {offsets = [1, 0], sizes = [1, 128], strides = [1, 1]} : vector<3x128xf32> to vector<1x128xf32>
    %15 = vector.broadcast %14 : vector<1x128xf32> to vector<8x128xf32>
    %16 = arith.addf %13, %15 : vector<8x128xf32>
    %cst_9 = arith.constant 2.000000e-01 : f32
    %17 = vector.broadcast %cst_9 : f32 to vector<8x128xf32>
    %18 = arith.mulf %17, %16 : vector<8x128xf32>
    %19 = arith.maximumf %16, %18 : vector<8x128xf32>
    %20 = arith.truncf %19 : vector<8x128xf32> to vector<8x128xbf16>
    %c0_10 = arith.constant 0 : index
    %c0_11 = arith.constant 0 : index
    %21 = vector.load %arg4[%c0_10, %c0_11] : memref<128x128xbf16, #tpu.memory_space<vmem>>, vector<128x128xbf16>
    %cst_12 = arith.constant dense<0.000000e+00> : vector<8x128xf32>
    %22 = tpu.matmul %20, %21, %cst_12 {dimension_numbers = #tpu.dot_dimension_numbers<[1], [0], [0], [1], [0, 0, 1, 1], [], []>} : vector<8x128xbf16>, vector<128x128xbf16>, vector<8x128xf32> -> vector<8x128xf32>
    %23 = vector.extract_strided_slice %0 {offsets = [2, 0], sizes = [1, 128], strides = [1, 1]} : vector<3x128xf32> to vector<1x128xf32>
    %24 = vector.broadcast %23 : vector<1x128xf32> to vector<8x128xf32>
    %25 = arith.addf %22, %24 : vector<8x128xf32>
    %cst_13 = arith.constant 2.000000e-01 : f32
    %26 = vector.broadcast %cst_13 : f32 to vector<8x128xf32>
    %27 = arith.mulf %26, %25 : vector<8x128xf32>
    %28 = arith.maximumf %25, %27 : vector<8x128xf32>
    %c0_14 = arith.constant 0 : index
    %c0_15 = arith.constant 0 : index
    %29 = vector.load %arg6[%c0_14, %c0_15] : memref<8x128xf32, #tpu.memory_space<vmem>>, vector<8x128xf32>
    tpu.vector_store %arg6[%c0_14, %c0_15], %28 {strides = array<i32>} : memref<8x128xf32, #tpu.memory_space<vmem>>, vector<8x128xf32>,
    return
  }
  func.func @transform_0(%arg0: i32) -> (i32, i32) {
    %c0_i32 = arith.constant 0 : i32
    %c0_i32_0 = arith.constant 0 : i32
    return %arg0, %c0_i32 : i32, i32
  }
  func.func @transform_1(%arg0: i32) -> (i32, i32) {
    %c0_i32 = arith.constant 0 : i32
    %c0_i32_0 = arith.constant 0 : i32
    %c0_i32_1 = arith.constant 0 : i32
    return %c0_i32, %c0_i32_0 : i32, i32
  }
  func.func @transform_2(%arg0: i32) -> (i32, i32) {
    %c0_i32 = arith.constant 0 : i32
    %c0_i32_0 = arith.constant 0 : i32
    %c0_i32_1 = arith.constant 0 : i32
    return %c0_i32, %c0_i32_0 : i32, i32
  }
  func.func @transform_3(%arg0: i32) -> (i32, i32) {
    %c0_i32 = arith.constant 0 : i32
    %c0_i32_0 = arith.constant 0 : i32
    %c0_i32_1 = arith.constant 0 : i32
    return %c0_i32, %c0_i32_0 : i32, i32
  }
  func.func @transform_4(%arg0: i32) -> (i32, i32) {
    %c0_i32 = arith.constant 0 : i32
    %c0_i32_0 = arith.constant 0 : i32
    %c0_i32_1 = arith.constant 0 : i32
    return %c0_i32, %c0_i32_0 : i32, i32
  }
  func.func @transform_5(%arg0: i32) -> (i32, i32) {
    %c0_i32 = arith.constant 0 : i32
    %c0_i32_0 = arith.constant 0 : i32
    return %arg0, %c0_i32 : i32, i32
  }
}

</mosaic_0001>

<llo_original>
// kernel: tpu_custom_call.1
$region0: #{tpu_custom_call.1}
  #allocation0 [shape = 'u32[]', space=smem, size = 0x4, offset = 0x4, fixed_abs, tag = 'smem constant byte address 0x4 - core index']
  #allocation1 [shape = 'u32[144,128]{1,0:T(1,128)}', space=vmem, size = 0x12000, scoped, tag = 'internal scratch']
  %s0 = inlined_call_operand.hbm [shape: f32[8,128], index: 0, kind: input, shape index: {}]
  %s1 = inlined_call_operand.hbm [shape: f32[8,128], index: 1, kind: output, shape index: {}]
  %s2 = sld [smem:[#allocation0]]
  $region18: #{tpu_custom_call.1} parent=0
    _
  %s4 = ssub.s32 1, %s2
  %s5 = scalar_select 0, %s4, %s2
  $region1: #{tpu_custom_call.1} parent=0
    #allocation2 [shape = 'u8[4096]{0}', space=vmem, size = 0x1000, scoped, tag = 'input window, operand 0, single buffered']
    #allocation3 [shape = 's32[1]{0}', space=sflag, size = 0x4, scoped, tag = 'scoped memory for tpu_custom_call.1']
    #allocation4 [shape = 's32[1]{0}', space=sflag, size = 0x4, scoped, tag = 'scoped memory for tpu_custom_call.1']
    #allocation5 [shape = 'u8[4096]{0}', space=vmem, size = 0x1000, scoped, tag = 'output window, operand 0, single buffered']
    %6 = vsyncpa [#allocation3], 0
    %7 = vsyncpa [#allocation4], 0
    // Predicated region
    $region2: #{tpu_custom_call.1} parent=1 // pred_check
      _
    $region3: #{tpu_custom_call.1} parent=1 // pred_check_branch
      %9 = sbr.rel (0) target = $region5
    $region4: #{tpu_custom_call.1} parent=1 // pred_region
      %s11 = ssub.s32 128, 128
      %12 = vsyncadd [#allocation3], %s11
      %s14 = sshll.u32 [#allocation2], 4
      %s15 = int_to_ptr.vmem [resolvable:$true] %s14
      %17 = dma.hbm_to_vmem [thread:$0]  %s0, 128, %s15, [#allocation3]
    $region5: #{tpu_custom_call.1} parent=1 // pred_fallthru
      _
    // Predicated region
    $region6: #{tpu_custom_call.1} parent=1 // pred_check
      _
    $region7: #{tpu_custom_call.1} parent=1 // pred_check_branch
      %19 = sbr.rel (0) target = $region9
    $region8: #{tpu_custom_call.1} parent=1 // pred_region
      %20 = dma.done [#allocation3], 128
    $region9: #{tpu_custom_call.1} parent=1 // pred_fallthru
      _
    %v21 = vld [vmem:[#allocation2] sm:$0xff]
    %22 = vst [vmem:[#allocation5] sm:$0xff] %v21
    // Predicated region
    $region10: #{tpu_custom_call.1} parent=1 // pred_check
      _
    $region11: #{tpu_custom_call.1} parent=1 // pred_check_branch
      %24 = sbr.rel (0) target = $region13
    $region12: #{tpu_custom_call.1} parent=1 // pred_region
      %s26 = ssub.s32 128, 128
      %27 = vsyncadd [#allocation4], %s26
      %s29 = sshll.u32 [#allocation5], 4
      %s30 = int_to_ptr.vmem [resolvable:$true] %s29
      %32 = dma.vmem_to_hbm [thread:$0]  %s30, 128, %s1, [#allocation4]
    $region13: #{tpu_custom_call.1} parent=1 // pred_fallthru
      _
    // Predicated region
    $region14: #{tpu_custom_call.1} parent=1 // pred_check
      _
    $region15: #{tpu_custom_call.1} parent=1 // pred_check_branch
      %34 = sbr.rel (0) target = $region17
    $region16: #{tpu_custom_call.1} parent=1 // pred_region
      %35 = dma.done [#allocation4], 128
    $region17: #{tpu_custom_call.1} parent=1 // pred_fallthru
      _
    %36 = vsyncpa [#allocation3], 1
    %37 = vsyncpa [#allocation4], 1

// kernel: tpu_custom_call.1
$region0: #{tpu_custom_call.1}
  #allocation0 [shape = 'u32[]', space=smem, size = 0x4, offset = 0x4, fixed_abs, tag = 'smem constant byte address 0x4 - core index']
  #allocation1 [shape = 'u32[144,128]{1,0:T(1,128)}', space=vmem, size = 0x12000, scoped, tag = 'internal scratch']
  %s0 = inlined_call_operand.hbm [shape: f32[8,128], index: 0, kind: input, shape index: {}]
  %s1 = inlined_call_operand.hbm [shape: bf16[128,128], index: 1, kind: input, shape index: {}]
  %s2 = inlined_call_operand.hbm [shape: bf16[128,128], index: 2, kind: input, shape index: {}]
  %s3 = inlined_call_operand.hbm [shape: bf16[128,128], index: 3, kind: input, shape index: {}]
  %s4 = inlined_call_operand.vmem [shape: f32[3,128], index: 4, kind: input, shape index: {}]
  %s5 = inlined_call_operand.hbm [shape: f32[8,128], index: 5, kind: output, shape index: {}]
  %s6 = sld [smem:[#allocation0]]
  $region46: #{tpu_custom_call.1} parent=0
    _
  %s8 = ssub.s32 1, %s6
  %s9 = scalar_select 0, %s8, %s6
  $region1: #{tpu_custom_call.1} parent=0
    #allocation2 [shape = 'u8[4096]{0}', space=vmem, size = 0x1000, scoped, tag = 'input window, operand 0, single buffered']
    #allocation3 [shape = 's32[1]{0}', space=sflag, size = 0x4, scoped, tag = 'scoped memory for tpu_custom_call.1']
    #allocation4 [shape = 's32[1]{0}', space=sflag, size = 0x4, scoped, tag = 'scoped memory for tpu_custom_call.1']
    #allocation5 [shape = 'u8[32768]{0}', space=vmem, size = 0x8000, scoped, tag = 'input window, operand 1, single buffered']
    #allocation6 [shape = 's32[1]{0}', space=sflag, size = 0x4, scoped, tag = 'scoped memory for tpu_custom_call.1']
    #allocation7 [shape = 'u8[32768]{0}', space=vmem, size = 0x8000, scoped, tag = 'input window, operand 2, single buffered']
    #allocation8 [shape = 'u8[32768]{0}', space=vmem, size = 0x8000, scoped, tag = 'input window, operand 3, single buffered']
    #allocation9 [shape = 's32[1]{0}', space=sflag, size = 0x4, scoped, tag = 'scoped memory for tpu_custom_call.1']
    #allocation10 [shape = 'u8[4096]{0}', space=vmem, size = 0x1000, scoped, tag = 'output window, operand 0, single buffered']
    %10 = vsyncpa [#allocation3], 0
    %11 = vsyncpa [#allocation6], 0
    %12 = vsyncpa [#allocation9], 0
    %13 = vsyncpa [#allocation4], 0
    // Predicated region
    $region2: #{tpu_custom_call.1} parent=1 // pred_check
      _
    $region3: #{tpu_custom_call.1} parent=1 // pred_check_branch
      %15 = sbr.rel (0) target = $region5
    $region4: #{tpu_custom_call.1} parent=1 // pred_region
      %s17 = ssub.s32 128, 128
      %18 = vsyncadd [#allocation3], %s17
      %s20 = sshll.u32 [#allocation2], 4
      %s21 = int_to_ptr.vmem [resolvable:$true] %s20
      %23 = dma.hbm_to_vmem [thread:$0]  %s0, 128, %s21, [#allocation3]
    $region5: #{tpu_custom_call.1} parent=1 // pred_fallthru
      _
    // Predicated region
    $region6: #{tpu_custom_call.1} parent=1 // pred_check
      _
    $region7: #{tpu_custom_call.1} parent=1 // pred_check_branch
      %25 = sbr.rel (0) target = $region9
    $region8: #{tpu_custom_call.1} parent=1 // pred_region
      %s27 = ssub.s32 1024, 1024
      %28 = vsyncadd [#allocation6], %s27
      %s29 = sshll.u32 [#allocation5], 4
      %s30 = int_to_ptr.vmem [resolvable:$true] %s29
      %35 = dma.hbm_to_vmem [thread:$0]  %s1, 1024, %s30, [#allocation6], 64, 64, 4
    $region9: #{tpu_custom_call.1} parent=1 // pred_fallthru
      _
    // Predicated region
    $region10: #{tpu_custom_call.1} parent=1 // pred_check
      _
    $region11: #{tpu_custom_call.1} parent=1 // pred_check_branch
      %37 = sbr.rel (0) target = $region13
    $region12: #{tpu_custom_call.1} parent=1 // pred_region
      %s39 = ssub.s32 1024, 1024
      %40 = vsyncadd [#allocation6], %s39
      %s41 = sshll.u32 [#allocation7], 4
      %s42 = int_to_ptr.vmem [resolvable:$true] %s41
      %47 = dma.hbm_to_vmem [thread:$0]  %s2, 1024, %s42, [#allocation6], 64, 64, 4
    $region13: #{tpu_custom_call.1} parent=1 // pred_fallthru
      _
    // Predicated region
    $region14: #{tpu_custom_call.1} parent=1 // pred_check
      _
    $region15: #{tpu_custom_call.1} parent=1 // pred_check_branch
      %49 = sbr.rel (0) target = $region17
    $region16: #{tpu_custom_call.1} parent=1 // pred_region
      %s51 = ssub.s32 1024, 1024
      %52 = vsyncadd [#allocation9], %s51
      %s53 = sshll.u32 [#allocation8], 4
      %s54 = int_to_ptr.vmem [resolvable:$true] %s53
      %59 = dma.hbm_to_vmem [thread:$0]  %s3, 1024, %s54, [#allocation9], 64, 64, 4
    $region17: #{tpu_custom_call.1} parent=1 // pred_fallthru
      _
    // Predicated region
    $region18: #{tpu_custom_call.1} parent=1 // pred_check
      _
    $region19: #{tpu_custom_call.1} parent=1 // pred_check_branch
      %61 = sbr.rel (0) target = $region21
    $region20: #{tpu_custom_call.1} parent=1 // pred_region
      _
    $region21: #{tpu_custom_call.1} parent=1 // pred_fallthru
      _
    // Predicated region
    $region22: #{tpu_custom_call.1} parent=1 // pred_check
      _
    $region23: #{tpu_custom_call.1} parent=1 // pred_check_branch
      %63 = sbr.rel (0) target = $region25
    $region24: #{tpu_custom_call.1} parent=1 // pred_region
      %64 = dma.done [#allocation3], 128
    $region25: #{tpu_custom_call.1} parent=1 // pred_fallthru
      _
    // Predicated region
    $region26: #{tpu_custom_call.1} parent=1 // pred_check
      _
    $region27: #{tpu_custom_call.1} parent=1 // pred_check_branch
      %66 = sbr.rel (0) target = $region29
    $region28: #{tpu_custom_call.1} parent=1 // pred_region
      %67 = dma.done [#allocation6], 1024
    $region29: #{tpu_custom_call.1} parent=1 // pred_fallthru
      _
    // Predicated region
    $region30: #{tpu_custom_call.1} parent=1 // pred_check
      _
    $region31: #{tpu_custom_call.1} parent=1 // pred_check_branch
      %69 = sbr.rel (0) target = $region33
    $region32: #{tpu_custom_call.1} parent=1 // pred_region
      %70 = dma.done [#allocation6], 1024
    $region33: #{tpu_custom_call.1} parent=1 // pred_fallthru
      _
    // Predicated region
    $region34: #{tpu_custom_call.1} parent=1 // pred_check
      _
    $region35: #{tpu_custom_call.1} parent=1 // pred_check_branch
      %72 = sbr.rel (0) target = $region37
    $region36: #{tpu_custom_call.1} parent=1 // pred_region
      %73 = dma.done [#allocation9], 1024
    $region37: #{tpu_custom_call.1} parent=1 // pred_fallthru
      _
    %v75 = vld [vmem:[%s4] sm:$0x7]
    %v76 = vld [vmem:[#allocation2] sm:$0xff]
    %v77 = vpack.c.bf16 %v76, %v76
    %v78 = vld [vmem:[#allocation5] sm:$0xf]
    %v79 = vld [vmem:[#allocation5 + $0x4] sm:$0xf]
    %v80 = vld [vmem:[#allocation5 + $0x8] sm:$0xf]
    %v81 = vld [vmem:[#allocation5 + $0xc] sm:$0xf]
    %v82 = vld [vmem:[#allocation5 + $0x10] sm:$0xf]
    %v83 = vld [vmem:[#allocation5 + $0x14] sm:$0xf]
    %v84 = vld [vmem:[#allocation5 + $0x18] sm:$0xf]
    %v85 = vld [vmem:[#allocation5 + $0x1c] sm:$0xf]
    %v86 = vld [vmem:[#allocation5 + $0x20] sm:$0xf]
    %v87 = vld [vmem:[#allocation5 + $0x24] sm:$0xf]
    %v88 = vld [vmem:[#allocation5 + $0x28] sm:$0xf]
    %v89 = vld [vmem:[#allocation5 + $0x2c] sm:$0xf]
    %v90 = vld [vmem:[#allocation5 + $0x30] sm:$0xf]
    %v91 = vld [vmem:[#allocation5 + $0x34] sm:$0xf]
    %v92 = vld [vmem:[#allocation5 + $0x38] sm:$0xf]
    %v93 = vld [vmem:[#allocation5 + $0x3c] sm:$0xf]
    %v94 = vlaneseq
    %v95 = vshrl.u32 %v94, 7
    %v96 = vsub.s32 0, %v95
    %v97 = vrot.slane %v75, %v96
    %v114 = vunpack.c.l.b16 %v78
    %v115 = vunpack.c.l.b16 %v79
    %v116 = vunpack.c.l.b16 %v80
    %v117 = vunpack.c.l.b16 %v81
    %v118 = vunpack.c.l.b16 %v82
    %v119 = vunpack.c.l.b16 %v83
    %v120 = vunpack.c.l.b16 %v84
    %v121 = vunpack.c.l.b16 %v85
    %v122 = vunpack.c.l.b16 %v86
    %v123 = vunpack.c.l.b16 %v87
    %v124 = vunpack.c.l.b16 %v88
    %v125 = vunpack.c.l.b16 %v89
    %v126 = vunpack.c.l.b16 %v90
    %v127 = vunpack.c.l.b16 %v91
    %v128 = vunpack.c.l.b16 %v92
    %v129 = vunpack.c.l.b16 %v93
    %v130 = vpack.c.b16 %v115, %v114
    %v131 = vpack.c.b16 %v117, %v116
    %v132 = vpack.c.b16 %v119, %v118
    %v133 = vpack.c.b16 %v121, %v120
    %v134 = vpack.c.b16 %v123, %v122
    %v135 = vpack.c.b16 %v125, %v124
    %v136 = vpack.c.b16 %v127, %v126
    %v137 = vpack.c.b16 %v129, %v128
    %146 = vmatprep.subr.bf16.mxu0 0
    %147 = vmatpush1.bf16.msra.mxu0 %v130
    %148 = vmatprep.subr.bf16.mxu0 0
    %149 = vmatpush1.bf16.msra.mxu0 %v131
    %150 = vmatprep.subr.bf16.mxu0 0
    %151 = vmatpush1.bf16.msra.mxu0 %v132
    %152 = vmatprep.subr.bf16.mxu0 0
    %153 = vmatpush1.bf16.msra.mxu0 %v133
    %154 = vmatprep.subr.bf16.mxu0 0
    %155 = vmatpush1.bf16.msra.mxu0 %v134
    %156 = vmatprep.subr.bf16.mxu0 0
    %157 = vmatpush1.bf16.msra.mxu0 %v135
    %158 = vmatprep.subr.bf16.mxu0 0
    %159 = vmatpush1.bf16.msra.mxu0 %v136
    %160 = vmatprep.subr.bf16.mxu0 0
    %161 = vmatpush1.bf16.msra.mxu0 %v137
    %162 = vmatprep.subr.bf16.mxu0 0
    %163 = vmatpush1.bf16.msra.mxu0 0
    %164 = vmatprep.subr.bf16.mxu0 0
    %165 = vmatpush1.bf16.msra.mxu0 0
    %166 = vmatprep.subr.bf16.mxu0 0
    %167 = vmatpush1.bf16.msra.mxu0 0
    %168 = vmatprep.subr.bf16.mxu0 0
    %169 = vmatpush1.bf16.msra.mxu0 0
    %170 = vmatprep.subr.bf16.mxu0 0
    %171 = vmatpush1.bf16.msra.mxu0 0
    %172 = vmatprep.subr.bf16.mxu0 0
    %173 = vmatpush1.bf16.msra.mxu0 0
    %174 = vmatprep.subr.bf16.mxu0 0
    %175 = vmatpush1.bf16.msra.mxu0 0
    %176 = vmatprep.subr.bf16.mxu0 0
    %177 = vmatpush1.bf16.msra.mxu0 0
    %178 = vmatprep.mubr.bf16.mxu0 0
    %179 = vmatmul.mubr.bf16.gmra.mrb[0].mxu0 %v77
    %v180 = vpop.f32.mrb[0].mxu0
    %v181 = vadd.f32 %v97, %v180
    %v182 = vpop.f32.mrb[0].mxu0
    %v183 = vpop.f32.mrb[0].mxu0
    %v184 = vpop.f32.mrb[0].mxu0
    %185 = vdwg.mxu0
    %v186 = vmul.f32 %v181, 0.2
    %v187 = vmax.f32 %v181, %v186
    %v188 = vpack.c.bf16 %v187, %v187
    %v189 = vld [vmem:[#allocation7] sm:$0xf]
    %v190 = vld [vmem:[#allocation7 + $0x4] sm:$0xf]
    %v191 = vld [vmem:[#allocation7 + $0x8] sm:$0xf]
    %v192 = vld [vmem:[#allocation7 + $0xc] sm:$0xf]
    %v193 = vld [vmem:[#allocation7 + $0x10] sm:$0xf]
    %v194 = vld [vmem:[#allocation7 + $0x14] sm:$0xf]
    %v195 = vld [vmem:[#allocation7 + $0x18] sm:$0xf]
    %v196 = vld [vmem:[#allocation7 + $0x1c] sm:$0xf]
    %v197 = vld [vmem:[#allocation7 + $0x20] sm:$0xf]
    %v198 = vld [vmem:[#allocation7 + $0x24] sm:$0xf]
    %v199 = vld [vmem:[#allocation7 + $0x28] sm:$0xf]
    %v200 = vld [vmem:[#allocation7 + $0x2c] sm:$0xf]
    %v201 = vld [vmem:[#allocation7 + $0x30] sm:$0xf]
    %v202 = vld [vmem:[#allocation7 + $0x34] sm:$0xf]
    %v203 = vld [vmem:[#allocation7 + $0x38] sm:$0xf]
    %v204 = vld [vmem:[#allocation7 + $0x3c] sm:$0xf]
    %v205 = vlaneseq
    %v206 = vshrl.u32 %v205, 7
    %v207 = vsub.s32 1, %v206
    %v208 = vrot.slane %v75, %v207
    %v225 = vunpack.c.l.b16 %v189
    %v226 = vunpack.c.l.b16 %v190
    %v227 = vunpack.c.l.b16 %v191
    %v228 = vunpack.c.l.b16 %v192
    %v229 = vunpack.c.l.b16 %v193
    %v230 = vunpack.c.l.b16 %v194
    %v231 = vunpack.c.l.b16 %v195
    %v232 = vunpack.c.l.b16 %v196
    %v233 = vunpack.c.l.b16 %v197
    %v234 = vunpack.c.l.b16 %v198
    %v235 = vunpack.c.l.b16 %v199
    %v236 = vunpack.c.l.b16 %v200
    %v237 = vunpack.c.l.b16 %v201
    %v238 = vunpack.c.l.b16 %v202
    %v239 = vunpack.c.l.b16 %v203
    %v240 = vunpack.c.l.b16 %v204
    %v241 = vpack.c.b16 %v226, %v225
    %v242 = vpack.c.b16 %v228, %v227
    %v243 = vpack.c.b16 %v230, %v229
    %v244 = vpack.c.b16 %v232, %v231
    %v245 = vpack.c.b16 %v234, %v233
    %v246 = vpack.c.b16 %v236, %v235
    %v247 = vpack.c.b16 %v238, %v237
    %v248 = vpack.c.b16 %v240, %v239
    %257 = vmatprep.subr.bf16.mxu0 0
    %258 = vmatpush1.bf16.msra.mxu0 %v241
    %259 = vmatprep.subr.bf16.mxu0 0
    %260 = vmatpush1.bf16.msra.mxu0 %v242
    %261 = vmatprep.subr.bf16.mxu0 0
    %262 = vmatpush1.bf16.msra.mxu0 %v243
    %263 = vmatprep.subr.bf16.mxu0 0
    %264 = vmatpush1.bf16.msra.mxu0 %v244
    %265 = vmatprep.subr.bf16.mxu0 0
    %266 = vmatpush1.bf16.msra.mxu0 %v245
    %267 = vmatprep.subr.bf16.mxu0 0
    %268 = vmatpush1.bf16.msra.mxu0 %v246
    %269 = vmatprep.subr.bf16.mxu0 0
    %270 = vmatpush1.bf16.msra.mxu0 %v247
    %271 = vmatprep.subr.bf16.mxu0 0
    %272 = vmatpush1.bf16.msra.mxu0 %v248
    %273 = vmatprep.subr.bf16.mxu0 0
    %274 = vmatpush1.bf16.msra.mxu0 0
    %275 = vmatprep.subr.bf16.mxu0 0
    %276 = vmatpush1.bf16.msra.mxu0 0
    %277 = vmatprep.subr.bf16.mxu0 0
    %278 = vmatpush1.bf16.msra.mxu0 0
    %279 = vmatprep.subr.bf16.mxu0 0
    %280 = vmatpush1.bf16.msra.mxu0 0
    %281 = vmatprep.subr.bf16.mxu0 0
    %282 = vmatpush1.bf16.msra.mxu0 0
    %283 = vmatprep.subr.bf16.mxu0 0
    %284 = vmatpush1.bf16.msra.mxu0 0
    %285 = vmatprep.subr.bf16.mxu0 0
    %286 = vmatpush1.bf16.msra.mxu0 0
    %287 = vmatprep.subr.bf16.mxu0 0
    %288 = vmatpush1.bf16.msra.mxu0 0
    %289 = vmatprep.mubr.bf16.mxu0 0
    %290 = vmatmul.mubr.bf16.gmra.mrb[0].mxu0 %v188
    %v291 = vpop.f32.mrb[0].mxu0
    %v292 = vadd.f32 %v208, %v291
    %v293 = vpop.f32.mrb[0].mxu0
    %v294 = vpop.f32.mrb[0].mxu0
    %v295 = vpop.f32.mrb[0].mxu0
    %296 = vdwg.mxu0
    %v297 = vmul.f32 %v292, 0.2
    %v298 = vmax.f32 %v292, %v297
    %v299 = vpack.c.bf16 %v298, %v298
    %v300 = vld [vmem:[#allocation8] sm:$0xf]
    %v301 = vld [vmem:[#allocation8 + $0x4] sm:$0xf]
    %v302 = vld [vmem:[#allocation8 + $0x8] sm:$0xf]
    %v303 = vld [vmem:[#allocation8 + $0xc] sm:$0xf]
    %v304 = vld [vmem:[#allocation8 + $0x10] sm:$0xf]
    %v305 = vld [vmem:[#allocation8 + $0x14] sm:$0xf]
    %v306 = vld [vmem:[#allocation8 + $0x18] sm:$0xf]
    %v307 = vld [vmem:[#allocation8 + $0x1c] sm:$0xf]
    %v308 = vld [vmem:[#allocation8 + $0x20] sm:$0xf]
    %v309 = vld [vmem:[#allocation8 + $0x24] sm:$0xf]
    %v310 = vld [vmem:[#allocation8 + $0x28] sm:$0xf]
    %v311 = vld [vmem:[#allocation8 + $0x2c] sm:$0xf]
    %v312 = vld [vmem:[#allocation8 + $0x30] sm:$0xf]
    %v313 = vld [vmem:[#allocation8 + $0x34] sm:$0xf]
    %v314 = vld [vmem:[#allocation8 + $0x38] sm:$0xf]
    %v315 = vld [vmem:[#allocation8 + $0x3c] sm:$0xf]
    %v316 = vlaneseq
    %v317 = vshrl.u32 %v316, 7
    %v318 = vsub.s32 2, %v317
    %v319 = vrot.slane %v75, %v318
    %v336 = vunpack.c.l.b16 %v300
    %v337 = vunpack.c.l.b16 %v301
    %v338 = vunpack.c.l.b16 %v302
    %v339 = vunpack.c.l.b16 %v303
    %v340 = vunpack.c.l.b16 %v304
    %v341 = vunpack.c.l.b16 %v305
    %v342 = vunpack.c.l.b16 %v306
    %v343 = vunpack.c.l.b16 %v307
    %v344 = vunpack.c.l.b16 %v308
    %v345 = vunpack.c.l.b16 %v309
    %v346 = vunpack.c.l.b16 %v310
    %v347 = vunpack.c.l.b16 %v311
    %v348 = vunpack.c.l.b16 %v312
    %v349 = vunpack.c.l.b16 %v313
    %v350 = vunpack.c.l.b16 %v314
    %v351 = vunpack.c.l.b16 %v315
    %v352 = vpack.c.b16 %v337, %v336
    %v353 = vpack.c.b16 %v339, %v338
    %v354 = vpack.c.b16 %v341, %v340
    %v355 = vpack.c.b16 %v343, %v342
    %v356 = vpack.c.b16 %v345, %v344
    %v357 = vpack.c.b16 %v347, %v346
    %v358 = vpack.c.b16 %v349, %v348
    %v359 = vpack.c.b16 %v351, %v350
    %368 = vmatprep.subr.bf16.mxu0 0
    %369 = vmatpush1.bf16.msra.mxu0 %v352
    %370 = vmatprep.subr.bf16.mxu0 0
    %371 = vmatpush1.bf16.msra.mxu0 %v353
    %372 = vmatprep.subr.bf16.mxu0 0
    %373 = vmatpush1.bf16.msra.mxu0 %v354
    %374 = vmatprep.subr.bf16.mxu0 0
    %375 = vmatpush1.bf16.msra.mxu0 %v355
    %376 = vmatprep.subr.bf16.mxu0 0
    %377 = vmatpush1.bf16.msra.mxu0 %v356
    %378 = vmatprep.subr.bf16.mxu0 0
    %379 = vmatpush1.bf16.msra.mxu0 %v357
    %380 = vmatprep.subr.bf16.mxu0 0
    %381 = vmatpush1.bf16.msra.mxu0 %v358
    %382 = vmatprep.subr.bf16.mxu0 0
    %383 = vmatpush1.bf16.msra.mxu0 %v359
    %384 = vmatprep.subr.bf16.mxu0 0
    %385 = vmatpush1.bf16.msra.mxu0 0
    %386 = vmatprep.subr.bf16.mxu0 0
    %387 = vmatpush1.bf16.msra.mxu0 0
    %388 = vmatprep.subr.bf16.mxu0 0
    %389 = vmatpush1.bf16.msra.mxu0 0
    %390 = vmatprep.subr.bf16.mxu0 0
    %391 = vmatpush1.bf16.msra.mxu0 0
    %392 = vmatprep.subr.bf16.mxu0 0
    %393 = vmatpush1.bf16.msra.mxu0 0
    %394 = vmatprep.subr.bf16.mxu0 0
    %395 = vmatpush1.bf16.msra.mxu0 0
    %396 = vmatprep.subr.bf16.mxu0 0
    %397 = vmatpush1.bf16.msra.mxu0 0
    %398 = vmatprep.subr.bf16.mxu0 0
    %399 = vmatpush1.bf16.msra.mxu0 0
    %400 = vmatprep.mubr.bf16.mxu0 0
    %401 = vmatmul.mubr.bf16.gmra.mrb[0].mxu0 %v299
    %v402 = vpop.f32.mrb[0].mxu0
    %v403 = vadd.f32 %v319, %v402
    %v404 = vpop.f32.mrb[0].mxu0
    %v405 = vpop.f32.mrb[0].mxu0
    %v406 = vpop.f32.mrb[0].mxu0
    %407 = vdwg.mxu0
    %v408 = vmul.f32 %v403, 0.2
    %v409 = vmax.f32 %v403, %v408
    %410 = vst [vmem:[#allocation10] sm:$0xff] %v409
    // Predicated region
    $region38: #{tpu_custom_call.1} parent=1 // pred_check
      _
    $region39: #{tpu_custom_call.1} parent=1 // pred_check_branch
      %412 = sbr.rel (0) target = $region41
    $region40: #{tpu_custom_call.1} parent=1 // pred_region
      %s414 = ssub.s32 128, 128
      %415 = vsyncadd [#allocation4], %s414
      %s417 = sshll.u32 [#allocation10], 4
      %s418 = int_to_ptr.vmem [resolvable:$true] %s417
      %420 = dma.vmem_to_hbm [thread:$0]  %s418, 128, %s5, [#allocation4]
    $region41: #{tpu_custom_call.1} parent=1 // pred_fallthru
      _
    // Predicated region
    $region42: #{tpu_custom_call.1} parent=1 // pred_check
      _
    $region43: #{tpu_custom_call.1} parent=1 // pred_check_branch
      %422 = sbr.rel (0) target = $region45
    $region44: #{tpu_custom_call.1} parent=1 // pred_region
      %423 = dma.done [#allocation4], 128
    $region45: #{tpu_custom_call.1} parent=1 // pred_fallthru
      _
    %424 = vsyncpa [#allocation3], 1
    %425 = vsyncpa [#allocation6], 1
    %426 = vsyncpa [#allocation9], 1
    %427 = vsyncpa [#allocation4], 1

</llo_original>
